<compile_context>
chip_gen: v6e
topology: v6e:2x2x1
jax: 0.10.0
libtpu: 0.0.40
codegen_flags: <defaults>
</compile_context>

<pallas_src>
import functools

import jax
import jax.numpy as jnp
from jax.experimental import pallas as pl
from jax.experimental.pallas import tpu as pltpu

PAD_ID = 0

_BLOCK_BYTES_BUDGET = 8 * 1024 * 1024   # per input block; pipeline double-buffers it


def _cdiv(a, b):
    return -(-a // b)


def _round_up(x, m):
    return _cdiv(x, m) * m


def _pick_row_block(n, width, itemsize, max_rows=1024):
    """Rows per block: biggest tile fitting the VMEM budget (multiple of 8, or full dim)."""
    r = _BLOCK_BYTES_BUDGET // max(1, width * itemsize)
    r = min(r, max_rows)
    if r >= n:
        return n                                   # single full-dim block (always legal)
    r = min((r // 8) * 8, (n // 8) * 8)
    return max(8, r)


def _pick_col_block(m, k, itemsize, max_cols=4096):
    """Lane-block width for the transposed (classes-on-sublanes) CE layout."""
    if m <= 128:
        return m                                   # full-dim lane block
    c = _BLOCK_BYTES_BUDGET // max(1, k * itemsize)
    c = min(c, max_cols, (m // 128) * 128)
    return max(128, (c // 128) * 128)


def _split_outer(num_blocks, max_outer=2):
    """Split blocks into (parallel outer, arbitrary inner) grid axes (outer -> v7x TCs)."""
    n_outer = max_outer if num_blocks >= max_outer else 1
    n_inner = _cdiv(num_blocks, n_outer)
    return n_outer, n_inner


def _vmem_limit(*block_bytes):
    total = 2 * sum(block_bytes)                   # double-buffered pipeline
    total = int(total * 1.25) + (1 << 20)          # headroom for scratch / compiler temps
    return max(4 << 20, min(total, 48 << 20))      # safe on v7x (64 MiB) and v5e/v6e


# --------------------------------------------------------------------------- #
# Sequence NLL kernel: R rows per step, masked target gather, VPU accumulation.
# grid = (n_outer "parallel", n_inner "arbitrary").
# --------------------------------------------------------------------------- #
def _seq_nll_kernel(x_ref, tgt_ref, out_ref, acc_ref, *, n_rows, block_rows, n_inner):
    g = pl.program_id(0)
    t = pl.program_id(1)

    @pl.when(t == 0)
    def _init():
        acc_ref[...] = jnp.zeros_like(acc_ref)

    x = x_ref[...].astype(jnp.float32)                        # (R, V)
    tgt = tgt_ref[...]                                        # (R, 1) int32

    col = jax.lax.broadcasted_iota(jnp.int32, x.shape, 1)
    row = jax.lax.broadcasted_iota(jnp.int32, tgt.shape, 0)
    blk = g * n_inner + t                                     # unclamped logical block id
    valid = ((blk * block_rows + row) < n_rows) & (tgt != PAD_ID)

    picked = jnp.sum(jnp.where(col == tgt, x, 0.0), axis=1, keepdims=True)   # (R, 1)
    acc_ref[...] += jnp.where(valid, picked, 0.0)             # adds w_i * logp[i, tgt_i]

    @pl.when(t == n_inner - 1)
    def _finalize():
        s = jnp.sum(acc_ref[...])
        lane = jax.lax.broadcasted_iota(jnp.int32, out_ref.shape, 1)
        out_ref[...] = jnp.where(lane == 0, s, 0.0)           # per-group partial, lane 0


# --------------------------------------------------------------------------- #
# Cross-entropy, small K (< 128): transposed (K, M) layout, rows on the lane axis.
# --------------------------------------------------------------------------- #
def _ce_lane_kernel(xT_ref, tgt_ref, out_ref, acc_ref, *, n_rows, block_cols, n_inner):
    g = pl.program_id(0)
    t = pl.program_id(1)

    @pl.when(t == 0)
    def _init():
        acc_ref[...] = jnp.zeros_like(acc_ref)

    x = xT_ref[...].astype(jnp.float32)                       # (K, Rc)
    tgt = tgt_ref[...]                                        # (1, Rc) int32

    cls = jax.lax.broadcasted_iota(jnp.int32, x.shape, 0)
    col = jax.lax.broadcasted_iota(jnp.int32, tgt.shape, 1)
    blk = g * n_inner + t
    valid = (blk * block_cols + col) < n_rows

    mx = jnp.max(x, axis=0, keepdims=True)
    lse = jnp.log(jnp.sum(jnp.exp(x - mx), axis=0, keepdims=True)) + mx
    tl = jnp.sum(jnp.where(cls == tgt, x, 0.0), axis=0, keepdims=True)
    acc_ref[...] += jnp.where(valid, lse - tl, 0.0)

    @pl.when(t == n_inner - 1)
    def _finalize():
        s = jnp.sum(acc_ref[...])
        lane = jax.lax.broadcasted_iota(jnp.int32, out_ref.shape, 1)
        out_ref[...] = jnp.where(lane == 0, s, 0.0)


# --------------------------------------------------------------------------- #
# Cross-entropy, large K (>= 128): row-major (R, K) blocks.
# --------------------------------------------------------------------------- #
def _ce_row_kernel(x_ref, tgt_ref, out_ref, acc_ref, *, n_rows, block_rows, n_inner):
    g = pl.program_id(0)
    t = pl.program_id(1)

    @pl.when(t == 0)
    def _init():
        acc_ref[...] = jnp.zeros_like(acc_ref)

    x = x_ref[...].astype(jnp.float32)                        # (R, K)
    tgt = tgt_ref[...]                                        # (R, 1) int32

    col = jax.lax.broadcasted_iota(jnp.int32, x.shape, 1)
    row = jax.lax.broadcasted_iota(jnp.int32, tgt.shape, 0)
    blk = g * n_inner + t
    valid = (blk * block_rows + row) < n_rows

    mx = jnp.max(x, axis=1, keepdims=True)
    lse = jnp.log(jnp.sum(jnp.exp(x - mx), axis=1, keepdims=True)) + mx
    tl = jnp.sum(jnp.where(col == tgt, x, 0.0), axis=1, keepdims=True)
    acc_ref[...] += jnp.where(valid, lse - tl, 0.0)

    @pl.when(t == n_inner - 1)
    def _finalize():
        s = jnp.sum(acc_ref[...])
        lane = jax.lax.broadcasted_iota(jnp.int32, out_ref.shape, 1)
        out_ref[...] = jnp.where(lane == 0, s, 0.0)


# --------------------------------------------------------------------------- #
# Wrappers
# --------------------------------------------------------------------------- #
def _seq_nll_sum(seq_inputs, seq_targets_i32):
    """Scalar f32: sum_i w_i * logp[i, tgt_i], with w_i = (tgt_i != PAD_ID)."""
    n, v = seq_inputs.shape
    itemsize = seq_inputs.dtype.itemsize
    r = _pick_row_block(n, v, itemsize)
    num_blocks = _cdiv(n, r)
    n_outer, n_inner = _split_outer(num_blocks)
    tgt2 = seq_targets_i32.reshape(n, 1)

    def row_block(g, t):
        return (jnp.minimum(g * n_inner + t, num_blocks - 1), 0)

    kernel = functools.partial(_seq_nll_kernel, n_rows=n, block_rows=r, n_inner=n_inner)
    cost = pl.CostEstimate(flops=3 * n * v, transcendentals=0,
                           bytes_accessed=n * v * itemsize + n * 4 + n_outer * 128 * 4)

    out = pl.pallas_call(
        kernel,
        out_shape=jax.ShapeDtypeStruct((1, n_outer * 128), jnp.float32),
        grid_spec=pltpu.PrefetchScalarGridSpec(
            num_scalar_prefetch=0,
            grid=(n_outer, n_inner),
            in_specs=[pl.BlockSpec((r, v), row_block),
                      pl.BlockSpec((r, 1), row_block)],
            out_specs=pl.BlockSpec((1, 128), lambda g, t: (0, g)),
            scratch_shapes=[pltpu.VMEM((r, 1), jnp.float32)],
        ),
        compiler_params=pltpu.CompilerParams(
            dimension_semantics=("parallel", "arbitrary"),
            vmem_limit_bytes=_vmem_limit(r * v * itemsize, r * 4),
        ),
        cost_estimate=cost,
    )(seq_inputs, tgt2)
    return jnp.sum(out)            # all lanes except lane 0 of each partial block are zero


def _ce_sum_lane(class_inputs, class_targets_i32):
    """sum_i (logsumexp - target logit), small class count: rows on the lane axis."""
    m, k = class_inputs.shape
    itemsize = class_inputs.dtype.itemsize
    xT = class_inputs.T                          # small array (K < 128): cheap layout change
    tgt2 = class_targets_i32.reshape(1, m)
    rc = _pick_col_block(m, k, itemsize)
    num_blocks = _cdiv(m, rc)
    n_outer, n_inner = _split_outer(num_blocks)

    def col_block(g, t):
        return (0, jnp.minimum(g * n_inner + t, num_blocks - 1))

    kernel = functools.partial(_ce_lane_kernel, n_rows=m, block_cols=rc, n_inner=n_inner)
    cost = pl.CostEstimate(flops=6 * m * k, transcendentals=m * k,
                           bytes_accessed=m * k * itemsize + m * 4 + n_outer * 128 * 4)

    out = pl.pallas_call(
        kernel,
        out_shape=jax.ShapeDtypeStruct((1, n_outer * 128), jnp.float32),
        grid_spec=pltpu.PrefetchScalarGridSpec(
            num_scalar_prefetch=0,
            grid=(n_outer, n_inner),
            in_specs=[pl.BlockSpec((k, rc), col_block),
                      pl.BlockSpec((1, rc), col_block)],
            out_specs=pl.BlockSpec((1, 128), lambda g, t: (0, g)),
            scratch_shapes=[pltpu.VMEM((1, rc), jnp.float32)],
        ),
        compiler_params=pltpu.CompilerParams(
            dimension_semantics=("parallel", "arbitrary"),
            vmem_limit_bytes=_vmem_limit(k * rc * itemsize, rc * 4),
        ),
        cost_estimate=cost,
    )(xT, tgt2)
    return jnp.sum(out)


def _ce_sum_row(class_inputs, class_targets_i32):
    """sum_i (logsumexp - target logit), large class count: row-major (R, K) blocks."""
    m, k = class_inputs.shape
    itemsize = class_inputs.dtype.itemsize
    tgt2 = class_targets_i32.reshape(m, 1)
    r = _pick_row_block(m, k, itemsize)
    num_blocks = _cdiv(m, r)
    n_outer, n_inner = _split_outer(num_blocks)

    def row_block(g, t):
        return (jnp.minimum(g * n_inner + t, num_blocks - 1), 0)

    kernel = functools.partial(_ce_row_kernel, n_rows=m, block_rows=r, n_inner=n_inner)
    cost = pl.CostEstimate(flops=6 * m * k, transcendentals=m * k,
                           bytes_accessed=m * k * itemsize + m * 4 + n_outer * 128 * 4)

    out = pl.pallas_call(
        kernel,
        out_shape=jax.ShapeDtypeStruct((1, n_outer * 128), jnp.float32),
        grid_spec=pltpu.PrefetchScalarGridSpec(
            num_scalar_prefetch=0,
            grid=(n_outer, n_inner),
            in_specs=[pl.BlockSpec((r, k), row_block),
                      pl.BlockSpec((r, 1), row_block)],
            out_specs=pl.BlockSpec((1, 128), lambda g, t: (0, g)),
            scratch_shapes=[pltpu.VMEM((r, 1), jnp.float32)],
        ),
        compiler_params=pltpu.CompilerParams(
            dimension_semantics=("parallel", "arbitrary"),
            vmem_limit_bytes=_vmem_limit(r * k * itemsize, r * 4),
        ),
        cost_estimate=cost,
    )(class_inputs, tgt2)
    return jnp.sum(out)


def mix_loss(seq_inputs, seq_targets, class_inputs, class_targets, alpha):
    """seq_inputs: (N, V) log-probs (f32/bf16); seq_targets: (N,) int;
    class_inputs: (M, K) logits; class_targets: (M,) int. Returns scalar f32 loss."""
    seq_tgt = seq_targets.astype(jnp.int32)
    cls_tgt = class_targets.astype(jnp.int32)

    # SequenceLoss = NLLLoss(weight, weight[PAD_ID]=0), reduction='mean'.
    seq_sum = _seq_nll_sum(seq_inputs, seq_tgt)
    w_sum = jnp.sum((seq_tgt != PAD_ID).astype(jnp.float32))   # denominator (tiny, in XLA)
    sl = -seq_sum / w_sum                                      # 0/0 -> NaN, matches torch

    # CrossEntropyLoss, mean reduction.
    if class_inputs.shape[1] < 128:
        ce_sum = _ce_sum_lane(class_inputs, cls_tgt)
    else:
        ce_sum = _ce_sum_row(class_inputs, cls_tgt)
    cel = ce_sum / jnp.float32(class_inputs.shape[0])

    return sl + jnp.asarray(alpha, jnp.float32) * cel


def _reference_mix_loss(seq_inputs, seq_targets, class_inputs, class_targets, alpha):
    # Plain-JAX reference mirroring torch semantics.
    n = seq_inputs.shape[0]
    picked = seq_inputs.astype(jnp.float32)[jnp.arange(n), seq_targets]
    w = (seq_targets != PAD_ID).astype(jnp.float32)
    sl = -jnp.sum(w * picked) / jnp.sum(w)
    m = class_inputs.shape[0]
    lse = jax.scipy.special.logsumexp(class_inputs.astype(jnp.float32), axis=1)
    cel = jnp.mean(lse - class_inputs.astype(jnp.float32)[jnp.arange(m), class_targets])
    return sl + alpha * cel


if __name__ == "__main__":
    # ---- Test 1: small shapes implied by the module (char vocab, few edit classes) ----
    key = jax.random.PRNGKey(0)
    k1, k2, k3, k4 = jax.random.split(key, 4)

    vocab_size = 256
    num_classes = 4
    seq_len = 8            # flattened (batch * time) decoder positions
    batch = 2
    alpha = 0.5

    seq_inputs = jax.nn.log_softmax(
        jax.random.normal(k1, (seq_len, vocab_size), dtype=jnp.float32), axis=-1)
    seq_targets = jax.random.randint(k2, (seq_len,), 0, vocab_size, dtype=jnp.int32)
    seq_targets = seq_targets.at[0].set(PAD_ID)          # exercise the zero-weight PAD path
    class_inputs = jax.random.normal(k3, (batch, num_classes), dtype=jnp.float32)
    class_targets = jax.random.randint(k4, (batch,), 0, num_classes, dtype=jnp.int32)

    loss = jax.block_until_ready(
        mix_loss(seq_inputs, seq_targets, class_inputs, class_targets, alpha))
    ref = _reference_mix_loss(seq_inputs, seq_targets, class_inputs, class_targets, alpha)
    assert jnp.allclose(loss, ref, rtol=1e-5, atol=1e-5), (loss, ref)

    # ---- Test 2: ragged row counts + K >= 128 (row-major CE path, clamped outer split) ----
    k5, k6, k7, k8 = jax.random.split(jax.random.PRNGKey(1), 4)
    n2, v2, m2, c2 = 2500, 200, 2500, 200
    si2 = jax.nn.log_softmax(jax.random.normal(k5, (n2, v2), jnp.float32), axis=-1)
    st2 = jax.random.randint(k6, (n2,), 0, v2, dtype=jnp.int32).at[3].set(PAD_ID)
    ci2 = jax.random.normal(k7, (m2, c2), jnp.float32)
    ct2 = jax.random.randint(k8, (m2,), 0, c2, dtype=jnp.int32)
    loss2 = jax.block_until_ready(mix_loss(si2, st2, ci2, ct2, 0.25))
    ref2 = _reference_mix_loss(si2, st2, ci2, ct2, 0.25)
    assert jnp.allclose(loss2, ref2, rtol=1e-5, atol=1e-4), (loss2, ref2)

    # ---- Test 3: small class count, many rows (lane-major CE path, multi-block) ----
    k9, k10, k11, k12 = jax.random.split(jax.random.PRNGKey(2), 4)
    n3, v3, m3, c3 = 64, 128, 700, 6
    si3 = jax.nn.log_softmax(jax.random.normal(k9, (n3, v3), jnp.float32), axis=-1)
    st3 = jax.random.randint(k10, (n3,), 0, v3, dtype=jnp.int32).at[5].set(PAD_ID)
    ci3 = jax.random.normal(k11, (m3, c3), jnp.float32)
    ct3 = jax.random.randint(k12, (m3,), 0, c3, dtype=jnp.int32)
    loss3 = jax.block_until_ready(mix_loss(si3, st3, ci3, ct3, 1.0))
    ref3 = _reference_mix_loss(si3, st3, ci3, ct3, 1.0)
    assert jnp.allclose(loss3, ref3, rtol=1e-5, atol=1e-4), (loss3, ref3)

    print("KERNEL_OK")
</pallas_src>

<mosaic_0001>
module attributes {stable_mosaic.version = 11 : i64} {
  func.func @_seq_nll_kernel(%arg0: i32, %arg1: i32, %arg2: memref<8x256xf32, #tpu.memory_space<vmem>>, %arg3: memref<8x1xi32, #tpu.memory_space<vmem>>, %arg4: memref<1x128xf32, #tpu.memory_space<vmem>>, %arg5: memref<8x1xf32, #tpu.memory_space<vmem>>) attributes {dimension_semantics = [#tpu.dimension_semantics<parallel>, #tpu.dimension_semantics<arbitrary>], iteration_bounds = array<i64: 1, 1>, scalar_prefetch = 0 : i64, scratch_operands = 1 : i64, tpu.core_type = #tpu.core_type<tc>, window_params = [{transform_indices = @transform_0, window_bounds = array<i64: 8, 256>}, {transform_indices = @transform_1, window_bounds = array<i64: 8, 1>}, {transform_indices = @transform_2, window_bounds = array<i64: 1, 128>}]} {
    %c0_i32 = arith.constant 0 : i32
    %0 = arith.cmpi eq, %arg1, %c0_i32 : i32
    %1 = arith.extui %0 : i1 to i32
    %c0_i32_0 = arith.constant 0 : i32
    %2 = arith.cmpi ne, %1, %c0_i32_0 : i32
    scf.if %2 {
      %cst_14 = arith.constant 0.000000e+00 : f32
      %31 = vector.broadcast %cst_14 : f32 to vector<8x1xf32>
      %c0_15 = arith.constant 0 : index
      %c0_16 = arith.constant 0 : index
      %32 = vector.load %arg5[%c0_15, %c0_16] : memref<8x1xf32, #tpu.memory_space<vmem>>, vector<8x1xf32>
      tpu.vector_store %arg5[%c0_15, %c0_16], %31 {strides = array<i32>} : memref<8x1xf32, #tpu.memory_space<vmem>>, vector<8x1xf32>,
    } else {
    }
    %c0 = arith.constant 0 : index
    %c0_1 = arith.constant 0 : index
    %3 = vector.load %arg2[%c0, %c0_1] : memref<8x256xf32, #tpu.memory_space<vmem>>, vector<8x256xf32>
    %c0_2 = arith.constant 0 : index
    %c0_3 = arith.constant 0 : index
    %4 = vector.load %arg3[%c0_2, %c0_3] : memref<8x1xi32, #tpu.memory_space<vmem>>, vector<8x1xi32>
    %5 = tpu.iota {dimensions = array<i32: 1>} : vector<8x256xi32>
    %6 = tpu.iota {dimensions = array<i32: 0>} : vector<8x1xi32>
    %c1_i32 = arith.constant 1 : i32
    %7 = arith.muli %arg0, %c1_i32 : i32
    %8 = arith.addi %7, %arg1 : i32
    %c8_i32 = arith.constant 8 : i32
    %9 = arith.muli %8, %c8_i32 : i32
    %10 = vector.broadcast %9 : i32 to vector<8x1xi32>
    %11 = arith.addi %10, %6 : vector<8x1xi32>
    %c8_i32_4 = arith.constant 8 : i32
    %12 = vector.broadcast %c8_i32_4 : i32 to vector<8x1xi32>
    %13 = arith.cmpi slt, %11, %12 : vector<8x1xi32>
    %c0_i32_5 = arith.constant 0 : i32
    %14 = vector.broadcast %c0_i32_5 : i32 to vector<8x1xi32>
    %15 = arith.cmpi ne, %4, %14 : vector<8x1xi32>
    %16 = arith.andi %13, %15 : vector<8x1xi1>
    %17 = vector.broadcast %4 : vector<8x1xi32> to vector<8x256xi32>
    %18 = arith.cmpi eq, %5, %17 : vector<8x256xi32>
    %cst = arith.constant 0.000000e+00 : f32
    %19 = vector.broadcast %cst : f32 to vector<8x256xf32>
    %20 = arith.select %18, %3, %19 : vector<8x256xi1>, vector<8x256xf32>
    %cst_6 = arith.constant dense<0.000000e+00> : vector<8xf32>
    %21 = vector.multi_reduction <add>, %20, %cst_6 [1] : vector<8x256xf32> to vector<8xf32>
    %22 = vector.shape_cast %21 : vector<8xf32> to vector<8x1xf32>
    %c0_7 = arith.constant 0 : index
    %c0_8 = arith.constant 0 : index
    %23 = vector.load %arg5[%c0_7, %c0_8] : memref<8x1xf32, #tpu.memory_space<vmem>>, vector<8x1xf32>
    %cst_9 = arith.constant 0.000000e+00 : f32
    %24 = vector.broadcast %cst_9 : f32 to vector<8x1xf32>
    %25 = arith.select %16, %22, %24 : vector<8x1xi1>, vector<8x1xf32>
    %26 = arith.addf %23, %25 : vector<8x1xf32>
    %c0_10 = arith.constant 0 : index
    %c0_11 = arith.constant 0 : index
    %27 = vector.load %arg5[%c0_10, %c0_11] : memref<8x1xf32, #tpu.memory_space<vmem>>, vector<8x1xf32>
    tpu.vector_store %arg5[%c0_10, %c0_11], %26 {strides = array<i32>} : memref<8x1xf32, #tpu.memory_space<vmem>>, vector<8x1xf32>,
    %c0_i32_12 = arith.constant 0 : i32
    %28 = arith.cmpi eq, %arg1, %c0_i32_12 : i32
    %29 = arith.extui %28 : i1 to i32
    %c0_i32_13 = arith.constant 0 : i32
    %30 = arith.cmpi ne, %29, %c0_i32_13 : i32
    scf.if %30 {
      %c0_14 = arith.constant 0 : index
      %c0_15 = arith.constant 0 : index
      %31 = vector.load %arg5[%c0_14, %c0_15] : memref<8x1xf32, #tpu.memory_space<vmem>>, vector<8x1xf32>
      %32 = vector.shape_cast %31 : vector<8x1xf32> to vector<1x8x1xf32>
      %cst_16 = arith.constant dense<0.000000e+00> : vector<1xf32>
      %33 = vector.multi_reduction <add>, %32, %cst_16 [1, 2] : vector<1x8x1xf32> to vector<1xf32>
      %34 = vector.shape_cast %33 : vector<1xf32> to vector<1x1x1xf32>
      %35 = vector.extract %34[0, 0, 0] : f32 from vector<1x1x1xf32>
      %36 = tpu.iota {dimensions = array<i32: 1>} : vector<1x128xi32>
      %c0_i32_17 = arith.constant 0 : i32
      %37 = vector.broadcast %c0_i32_17 : i32 to vector<1x128xi32>
      %38 = arith.cmpi eq, %36, %37 : vector<1x128xi32>
      %cst_18 = arith.constant 0.000000e+00 : f32
      %39 = vector.broadcast %35 : f32 to vector<1x128xf32>
      %40 = vector.broadcast %cst_18 : f32 to vector<1x128xf32>
      %41 = arith.select %38, %39, %40 : vector<1x128xi1>, vector<1x128xf32>
      %c0_19 = arith.constant 0 : index
      %c0_20 = arith.constant 0 : index
      %42 = vector.load %arg4[%c0_19, %c0_20] : memref<1x128xf32, #tpu.memory_space<vmem>>, vector<1x128xf32>
      tpu.vector_store %arg4[%c0_19, %c0_20], %41 {strides = array<i32>} : memref<1x128xf32, #tpu.memory_space<vmem>>, vector<1x128xf32>,
    } else {
    }
    return
  }
  func.func @transform_0(%arg0: i32, %arg1: i32) -> (i32, i32) {
    %c1_i32 = arith.constant 1 : i32
    %0 = arith.muli %arg0, %c1_i32 : i32
    %1 = arith.addi %0, %arg1 : i32
    %c0_i32 = arith.constant 0 : i32
    %2 = arith.minsi %1, %c0_i32 : i32
    %c0_i32_0 = arith.constant 0 : i32
    %c0_i32_1 = arith.constant 0 : i32
    return %2, %c0_i32_0 : i32, i32
  }
  func.func @transform_1(%arg0: i32, %arg1: i32) -> (i32, i32) {
    %c1_i32 = arith.constant 1 : i32
    %0 = arith.muli %arg0, %c1_i32 : i32
    %1 = arith.addi %0, %arg1 : i32
    %c0_i32 = arith.constant 0 : i32
    %2 = arith.minsi %1, %c0_i32 : i32
    %c0_i32_0 = arith.constant 0 : i32
    %c0_i32_1 = arith.constant 0 : i32
    return %2, %c0_i32_0 : i32, i32
  }
  func.func @transform_2(%arg0: i32, %arg1: i32) -> (i32, i32) {
    %c0_i32 = arith.constant 0 : i32
    %c0_i32_0 = arith.constant 0 : i32
    return %c0_i32, %arg0 : i32, i32
  }
}

</mosaic_0001>

<llo_original>
// kernel: tpu_custom_call.1
$region0: #{tpu_custom_call.1}
  #allocation0 [shape = 'u32[]', space=smem, size = 0x4, offset = 0x4, fixed_abs, tag = 'smem constant byte address 0x4 - core index']
  #allocation1 [shape = 'u32[144,128]{1,0:T(1,128)}', space=vmem, size = 0x12000, scoped, tag = 'internal scratch']
  #allocation2 [shape = 'f32[8,1]{1,0:T(8,128)}', space=vmem, size = 0x1000, scoped, tag = 'scratch operand']
  %s0 = inlined_call_operand.hbm [shape: f32[8,256], index: 0, kind: input, shape index: {}]
  %s1 = inlined_call_operand.vmem [shape: s32[8,1], index: 1, kind: input, shape index: {}]
  %s2 = inlined_call_operand.hbm [shape: f32[1,128], index: 2, kind: output, shape index: {}]
  %s3 = sld [smem:[#allocation0]]
  $region30: #{tpu_custom_call.1} parent=0
    _
  %s5 = ssub.s32 1, %s3
  %s6 = scalar_select 0, %s5, %s3
  $region1: #{tpu_custom_call.1} parent=0
    #allocation3 [shape = 'u8[8192]{0}', space=vmem, size = 0x2000, scoped, tag = 'input window, operand 0, single buffered']
    #allocation4 [shape = 's32[1]{0}', space=sflag, size = 0x4, scoped, tag = 'scoped memory for tpu_custom_call.1']
    #allocation5 [shape = 's32[1]{0}', space=sflag, size = 0x4, scoped, tag = 'scoped memory for tpu_custom_call.1']
    #allocation6 [shape = 'u8[512]{0}', space=vmem, size = 0x400, scoped, tag = 'output window, operand 0, single buffered']
    %7 = vsyncpa [#allocation4], 0
    %8 = vsyncpa [#allocation5], 0
    // Predicated region
    $region2: #{tpu_custom_call.1} parent=1 // pred_check
      _
    $region3: #{tpu_custom_call.1} parent=1 // pred_check_branch
      %10 = sbr.rel (0) target = $region5
    $region4: #{tpu_custom_call.1} parent=1 // pred_region
      %s11 = sadd.s32 0, 0
      %p12 = scmp.lt.s32.totalorder %s11, 0
      %s13 = scalar_select %p12, %s11, 0
      %s15 = ssub.s32 256, 256
      %16 = vsyncadd [#allocation4], %s15
      %s17 = smul.addr %s13, 2
      %s18 = smul.addr %s17, 128
      %s19 = scalar_lea.hbm %s0, %s18
      %s21 = sshll.u32 [#allocation3], 4
      %s22 = int_to_ptr.vmem [resolvable:$true] %s21
      %24 = dma.hbm_to_vmem [thread:$0]  %s19, 256, %s22, [#allocation4]
    $region5: #{tpu_custom_call.1} parent=1 // pred_fallthru
      _
    // Predicated region
    $region6: #{tpu_custom_call.1} parent=1 // pred_check
      _
    $region7: #{tpu_custom_call.1} parent=1 // pred_check_branch
      %26 = sbr.rel (0) target = $region9
    $region8: #{tpu_custom_call.1} parent=1 // pred_region
      %s27 = sadd.s32 0, 0
      %p28 = scmp.lt.s32.totalorder %s27, 0
      %s29 = scalar_select %p28, %s27, 0
      %p30 = scmp.lt.s32.totalorder %s29, 0
      %s31 = scalar_select %p30, %s29, 0
      %s32 = smul.addr %s31, 8
      %s33 = scalar_lea.vmem %s1, %s32
      %s34 = sadd.s32 0, 0
      %p35 = scmp.lt.s32.totalorder %s34, 0
      %s36 = scalar_select %p35, %s34, 0
    $region9: #{tpu_custom_call.1} parent=1 // pred_fallthru
      _
    // Predicated region
    $region10: #{tpu_custom_call.1} parent=1 // pred_check
      _
    $region11: #{tpu_custom_call.1} parent=1 // pred_check_branch
      %38 = sbr.rel (0) target = $region13
    $region12: #{tpu_custom_call.1} parent=1 // pred_region
      %39 = dma.done [#allocation4], 256
    $region13: #{tpu_custom_call.1} parent=1 // pred_fallthru
      _
    %s40 = sadd.s32 0, 0
    %p41 = scmp.lt.s32.totalorder %s40, 0
    %s42 = scalar_select %p41, %s40, 0
    %p43 = scmp.lt.s32.totalorder %s42, 0
    %s44 = scalar_select %p43, %s42, 0
    %s45 = smul.addr %s44, 8
    %s46 = scalar_lea.vmem %s1, %s45
    %s47 = sadd.s32 0, 0
    %p48 = scmp.lt.s32.totalorder %s47, 0
    %s49 = scalar_select %p48, %s47, 0
    %s50 = sadd.s32 0, 0
    %p51 = scmp.lt.s32.totalorder %s50, 0
    %s52 = scalar_select %p51, %s50, 0
    %p53 = scmp.lt.s32.totalorder %s52, 0
    %s54 = scalar_select %p53, %s52, 0
    %s55 = smul.addr %s54, 8
    %s56 = scalar_lea.vmem %s1, %s55
    %s57 = sadd.s32 0, 0
    %p58 = scmp.lt.s32.totalorder %s57, 0
    %s59 = scalar_select %p58, %s57, 0
    %p60 = scmp.eq.s32.totalorder 0, 0
    // Predicated region
    $region14: #{tpu_custom_call.1} parent=1 // pred_check
      %p61 = pneg %p60
    $region15: #{tpu_custom_call.1} parent=1 // pred_check_branch
      %63 = sbr.rel (%p61) target = $region17
    $region16: #{tpu_custom_call.1} parent=1 // pred_region
      %vm64 = vcmask 7168
      %65 = vst.msk [vmem:[#allocation2] sm:$0xff] %vm64, 0.0
    $region17: #{tpu_custom_call.1} parent=1 // pred_fallthru
      _
    %v66 = vld [vmem:[#allocation3] sm:$0xff]
    %v67 = vld [vmem:[#allocation3 + $0x8] sm:$0xff]
    %v68 = vld [vmem:[%s56] sm:$0xff]
    %v69 = vlaneseq
    %v70 = vand.u32 %v69, 127
    %v71 = vadd.s32 %v70, 128
    %v72 = vlaneseq
    %v73 = vshrl.u32 %v72, 7
    %s74 = sadd.s32 0, 0
    %s75 = smul.u32 %s74, 8
    %v76 = vstv %s75
    %v77 = vadd.s32 %v76, %v73
    %vm78 = vcmp.lt.s32.totalorder %v77, 8
    %vm79 = vcmp.ne.s32.totalorder %v68, 0
    %vm80 = vmand %vm78, %vm79
    %81 = vset.pattern.permute.xlu0 0
    %82 = vperm.xlu0 %81, %v68
    %v83 = vpop.permute.xlu0 %82
    %vm84 = vcmp.eq.s32.totalorder %v70, %v83
    %vm85 = vcmp.eq.s32.totalorder %v71, %v83
    %v86 = vsel %vm84, %v66, 0.0
    %v87 = vsel %vm85, %v67, 0.0
    %v88 = vadd.f32 %v86, %v87
    %89 = vadd.xlane.f32.xlu0 %v88
    %v90 = vpop.xlane.xlu0 %89
    %v91 = vld [vmem:[#allocation2] sm:$0xff]
    %v92 = vsel %vm80, %v90, 0.0
    %v93 = vadd.f32 %v91, %v92
    %vm94 = vcmask 7168
    %95 = vst.msk [vmem:[#allocation2] sm:$0xff] %vm94, %v93
    // Predicated region
    $region18: #{tpu_custom_call.1} parent=1 // pred_check
      %p96 = pneg %p60
    $region19: #{tpu_custom_call.1} parent=1 // pred_check_branch
      %98 = sbr.rel (%p96) target = $region21
    $region20: #{tpu_custom_call.1} parent=1 // pred_region
      %v99 = vld [vmem:[#allocation2] sm:$0xff]
      %v100 = vsel %vm94, %v99, 0.0
      %101 = vadd.xlane.f32.xlu0 %v100
      %v102 = vpop.xlane.xlu0 %101
      %v103 = vrot.slane %v102, 4
      %v104 = vadd.f32 %v102, %v103
      %v105 = vrot.slane %v104, 2
      %v106 = vadd.f32 %v104, %v105
      %v107 = vrot.slane %v106, 1
      %v108 = vadd.f32 %v106, %v107
      %s109 = vtos %v108
      %vm110 = vcmp.eq.s32.totalorder %v70, 0
      %v111 = vstv %s109
      %v112 = vsel %vm110, %v111, 0.0
      %113 = vst [vmem:[#allocation6] sm:$0x1] %v112
    $region21: #{tpu_custom_call.1} parent=1 // pred_fallthru
      _
    // Predicated region
    $region22: #{tpu_custom_call.1} parent=1 // pred_check
      _
    $region23: #{tpu_custom_call.1} parent=1 // pred_check_branch
      %115 = sbr.rel (0) target = $region25
    $region24: #{tpu_custom_call.1} parent=1 // pred_region
      %s117 = ssub.s32 16, 16
      %118 = vsyncadd [#allocation5], %s117
      %s120 = sshll.u32 [#allocation6], 4
      %s121 = int_to_ptr.vmem [resolvable:$true] %s120
      %123 = dma.vmem_to_hbm [thread:$0]  %s121, 16, %s2, [#allocation5]
    $region25: #{tpu_custom_call.1} parent=1 // pred_fallthru
      _
    // Predicated region
    $region26: #{tpu_custom_call.1} parent=1 // pred_check
      _
    $region27: #{tpu_custom_call.1} parent=1 // pred_check_branch
      %125 = sbr.rel (0) target = $region29
    $region28: #{tpu_custom_call.1} parent=1 // pred_region
      %126 = dma.done [#allocation5], 16
    $region29: #{tpu_custom_call.1} parent=1 // pred_fallthru
      _
    %127 = vsyncpa [#allocation4], 1
    %128 = vsyncpa [#allocation5], 1

</llo_original>
